<compile_context>
chip_gen: v5e
topology: v5e:2x2
jax: 0.10.0
libtpu: 0.0.40
codegen_flags: <defaults>
</compile_context>

<pallas_src>
import jax
import jax.numpy as jnp
from jax.experimental import pallas as pl
from jax.experimental.pallas import tpu as pltpu

LANES = 128
ROW_TILE_MAX = 2048     # 2048 x 128 f32 = 1 MiB per input block
NUM_SPLITS = 2          # leading "parallel" grid axis (both TCs on v7x)


def _round_up(x, m):
    return ((x + m - 1) // m) * m


def _sublane_multiple(*dtypes):
    # f32 -> 8, bf16 -> 16, int8/fp8 -> 32 (packed dtypes pack along sublanes).
    mult = 8
    for d in dtypes:
        item = max(1, jnp.dtype(d).itemsize)
        mult = max(mult, 8 * max(1, 4 // item))
    return mult


def _make_dice_kernel(row_tile, blocks_per_split, n_full_rows, n_rem, needs_mask):
    def kernel(p_ref, t_ref, out_ref):
        c = pl.program_id(0)
        j = pl.program_id(1)

        @pl.when(j == 0)
        def _init():
            out_ref[...] = jnp.zeros_like(out_ref)

        p = p_ref[...].astype(jnp.float32)
        t = t_ref[...].astype(jnp.float32)
        # sigmoid(x) = 0.5 * tanh(0.5 x) + 0.5  -> a single EUP op per element.
        s = 0.5 * jnp.tanh(0.5 * p) + 0.5

        if needs_mask:
            base_row = (c * blocks_per_split + j) * row_tile
            row = base_row + jax.lax.broadcasted_iota(jnp.int32, (row_tile, LANES), 0)
            col = jax.lax.broadcasted_iota(jnp.int32, (row_tile, LANES), 1)
            valid = (row < n_full_rows) | ((row == n_full_rows) & (col < n_rem))
            s = jnp.where(valid, s, 0.0)
            t = jnp.where(valid, t, 0.0)

        # Per-step partial sums: pure VPU adds into (8,128) vreg accumulators.
        inter = jnp.sum((s * t).reshape(row_tile // 8, 8, LANES), axis=0)
        both = jnp.sum((s + t).reshape(row_tile // 8, 8, LANES), axis=0)
        out_ref[0, 0] += inter
        out_ref[0, 1] += both

    return kernel


def dice_loss(preds, targets, smooth=1e-6):
    """Dice loss matching PyTorch DiceLoss.forward semantics."""
    assert preds.shape == targets.shape
    n = preds.size
    assert n > 0

    n_full_rows, n_rem = divmod(n, LANES)
    n_rows = n_full_rows + (1 if n_rem else 0)

    p_flat = jnp.ravel(preds)
    t_flat = jnp.ravel(targets)
    lane_pad = n_rows * LANES - n
    if lane_pad:
        # Only when numel isn't a multiple of 128 (rare); padded elements are
        # masked out inside the kernel, so the pad value is irrelevant.
        p_flat = jnp.pad(p_flat, (0, lane_pad))
        t_flat = jnp.pad(t_flat, (0, lane_pad))
    p2d = p_flat.reshape(n_rows, LANES)
    t2d = t_flat.reshape(n_rows, LANES)

    sub = _sublane_multiple(preds.dtype, targets.dtype)
    row_tile = _round_up(min(n_rows, ROW_TILE_MAX), sub)
    if row_tile > n_rows:
        # Tiny input: pad a handful of rows so one aligned block covers it.
        pad_rows = row_tile - n_rows
        p2d = jnp.pad(p2d, ((0, pad_rows), (0, 0)))
        t2d = jnp.pad(t2d, ((0, pad_rows), (0, 0)))
        n_rows = row_tile

    num_blocks = pl.cdiv(n_rows, row_tile)
    blocks_per_split = pl.cdiv(num_blocks, NUM_SPLITS)
    covered = NUM_SPLITS * blocks_per_split * row_tile * LANES
    needs_mask = covered != n

    def in_map(c, j):
        blk = c * blocks_per_split + j
        # Overhang steps (when num_blocks doesn't split evenly) re-read the last
        # valid block; their contribution is masked to zero inside the kernel.
        return (jnp.minimum(blk, num_blocks - 1), 0)

    kernel = _make_dice_kernel(
        row_tile, blocks_per_split, n_full_rows, n_rem, needs_mask
    )

    partials = pl.pallas_call(
        kernel,
        out_shape=jax.ShapeDtypeStruct((NUM_SPLITS, 2, 8, LANES), jnp.float32),
        grid_spec=pltpu.PrefetchScalarGridSpec(
            num_scalar_prefetch=0,
            grid=(NUM_SPLITS, blocks_per_split),
            in_specs=[
                pl.BlockSpec((row_tile, LANES), in_map),
                pl.BlockSpec((row_tile, LANES), in_map),
            ],
            out_specs=pl.BlockSpec((1, 2, 8, LANES), lambda c, j: (c, 0, 0, 0)),
        ),
        compiler_params=pltpu.CompilerParams(
            dimension_semantics=("parallel", "arbitrary"),
        ),
    )(p2d, t2d)

    intersection = jnp.sum(partials[:, 0])
    both = jnp.sum(partials[:, 1])  # = sum(sigmoid(preds)) + sum(targets)
    dice = (2.0 * intersection + smooth) / (both + smooth)
    return 1.0 - dice


def _reference_dice_loss(preds, targets, smooth=1e-6):
    p = jax.nn.sigmoid(preds.astype(jnp.float32))
    t = targets.astype(jnp.float32)
    inter = jnp.sum(p * t)
    dice = (2.0 * inter + smooth) / (jnp.sum(p) + jnp.sum(t) + smooth)
    return 1.0 - dice


if __name__ == "__main__":
    key = jax.random.PRNGKey(0)
    k1, k2 = jax.random.split(key)

    # Small NCHW-shaped example: batch=2, channels=4, spatial=16x16.
    preds = jax.random.normal(k1, (2, 4, 16, 16), dtype=jnp.float32)
    targets = (jax.random.uniform(k2, (2, 4, 16, 16)) > 0.5).astype(jnp.float32)

    loss = jax.block_until_ready(dice_loss(preds, targets))

    ref = _reference_dice_loss(preds, targets)
    assert jnp.allclose(loss, ref, atol=1e-4, rtol=1e-4), (loss, ref)

    print("KERNEL_OK")
</pallas_src>

<mosaic_0001>
module attributes {stable_mosaic.version = 11 : i64} {
  func.func @kernel(%arg0: i32, %arg1: i32, %arg2: memref<16x128xf32, #tpu.memory_space<vmem>>, %arg3: memref<16x128xf32, #tpu.memory_space<vmem>>, %arg4: memref<1x2x8x128xf32, #tpu.memory_space<vmem>>) attributes {dimension_semantics = [#tpu.dimension_semantics<parallel>, #tpu.dimension_semantics<arbitrary>], iteration_bounds = array<i64: 2, 1>, scalar_prefetch = 0 : i64, scratch_operands = 0 : i64, tpu.core_type = #tpu.core_type<tc>, window_params = [{transform_indices = @transform_0, window_bounds = array<i64: 16, 128>}, {transform_indices = @transform_1, window_bounds = array<i64: 16, 128>}, {transform_indices = @transform_2, window_bounds = array<i64: 1, 2, 8, 128>}]} {
    %c0_i32 = arith.constant 0 : i32
    %0 = arith.cmpi eq, %arg1, %c0_i32 : i32
    %1 = arith.extui %0 : i1 to i32
    %c0_i32_0 = arith.constant 0 : i32
    %2 = arith.cmpi ne, %1, %c0_i32_0 : i32
    scf.if %2 {
      %cst_28 = arith.constant 0.000000e+00 : f32
      %49 = vector.broadcast %cst_28 : f32 to vector<1x2x8x128xf32>
      %c0_29 = arith.constant 0 : index
      %c0_30 = arith.constant 0 : index
      %c0_31 = arith.constant 0 : index
      %c0_32 = arith.constant 0 : index
      %50 = vector.load %arg4[%c0_29, %c0_30, %c0_31, %c0_32] : memref<1x2x8x128xf32, #tpu.memory_space<vmem>>, vector<1x2x8x128xf32>
      tpu.vector_store %arg4[%c0_29, %c0_30, %c0_31, %c0_32], %49 {strides = array<i32>} : memref<1x2x8x128xf32, #tpu.memory_space<vmem>>, vector<1x2x8x128xf32>,
    } else {
    }
    %c0 = arith.constant 0 : index
    %c0_1 = arith.constant 0 : index
    %3 = vector.load %arg2[%c0, %c0_1] : memref<16x128xf32, #tpu.memory_space<vmem>>, vector<16x128xf32>
    %c0_2 = arith.constant 0 : index
    %c0_3 = arith.constant 0 : index
    %4 = vector.load %arg3[%c0_2, %c0_3] : memref<16x128xf32, #tpu.memory_space<vmem>>, vector<16x128xf32>
    %cst = arith.constant 5.000000e-01 : f32
    %5 = vector.broadcast %cst : f32 to vector<16x128xf32>
    %6 = arith.mulf %5, %3 : vector<16x128xf32>
    %7 = math.tanh %6 : vector<16x128xf32>
    %cst_4 = arith.constant 5.000000e-01 : f32
    %8 = vector.broadcast %cst_4 : f32 to vector<16x128xf32>
    %9 = arith.mulf %8, %7 : vector<16x128xf32>
    %cst_5 = arith.constant 5.000000e-01 : f32
    %10 = vector.broadcast %cst_5 : f32 to vector<16x128xf32>
    %11 = arith.addf %9, %10 : vector<16x128xf32>
    %c1_i32 = arith.constant 1 : i32
    %12 = arith.muli %arg0, %c1_i32 : i32
    %13 = arith.addi %12, %arg1 : i32
    %c16_i32 = arith.constant 16 : i32
    %14 = arith.muli %13, %c16_i32 : i32
    %15 = tpu.iota {dimensions = array<i32: 0>} : vector<16x128xi32>
    %16 = vector.broadcast %14 : i32 to vector<16x128xi32>
    %17 = arith.addi %16, %15 : vector<16x128xi32>
    %18 = tpu.iota {dimensions = array<i32: 1>} : vector<16x128xi32>
    %c16_i32_6 = arith.constant 16 : i32
    %19 = vector.broadcast %c16_i32_6 : i32 to vector<16x128xi32>
    %20 = arith.cmpi slt, %17, %19 : vector<16x128xi32>
    %c16_i32_7 = arith.constant 16 : i32
    %21 = vector.broadcast %c16_i32_7 : i32 to vector<16x128xi32>
    %22 = arith.cmpi eq, %17, %21 : vector<16x128xi32>
    %c0_i32_8 = arith.constant 0 : i32
    %23 = vector.broadcast %c0_i32_8 : i32 to vector<16x128xi32>
    %24 = arith.cmpi slt, %18, %23 : vector<16x128xi32>
    %25 = arith.andi %22, %24 : vector<16x128xi1>
    %26 = arith.ori %20, %25 : vector<16x128xi1>
    %cst_9 = arith.constant 0.000000e+00 : f32
    %27 = vector.broadcast %cst_9 : f32 to vector<16x128xf32>
    %28 = arith.select %26, %11, %27 : vector<16x128xi1>, vector<16x128xf32>
    %cst_10 = arith.constant 0.000000e+00 : f32
    %29 = vector.broadcast %cst_10 : f32 to vector<16x128xf32>
    %30 = arith.select %26, %4, %29 : vector<16x128xi1>, vector<16x128xf32>
    %31 = arith.mulf %28, %30 : vector<16x128xf32>
    %32 = vector.shape_cast %31 : vector<16x128xf32> to vector<2x8x128xf32>
    %cst_11 = arith.constant dense<0.000000e+00> : vector<8x128xf32>
    %33 = vector.multi_reduction <add>, %32, %cst_11 [0] : vector<2x8x128xf32> to vector<8x128xf32>
    %34 = arith.addf %28, %30 : vector<16x128xf32>
    %35 = vector.shape_cast %34 : vector<16x128xf32> to vector<2x8x128xf32>
    %cst_12 = arith.constant dense<0.000000e+00> : vector<8x128xf32>
    %36 = vector.multi_reduction <add>, %35, %cst_12 [0] : vector<2x8x128xf32> to vector<8x128xf32>
    %c0_13 = arith.constant 0 : index
    %c0_14 = arith.constant 0 : index
    %c0_15 = arith.constant 0 : index
    %c0_16 = arith.constant 0 : index
    %37 = vector.load %arg4[%c0_13, %c0_14, %c0_15, %c0_16] : memref<1x2x8x128xf32, #tpu.memory_space<vmem>>, vector<1x1x8x128xf32>
    %38 = vector.shape_cast %37 : vector<1x1x8x128xf32> to vector<8x128xf32>
    %39 = arith.addf %38, %33 : vector<8x128xf32>
    %c0_17 = arith.constant 0 : index
    %c0_18 = arith.constant 0 : index
    %c0_19 = arith.constant 0 : index
    %c0_20 = arith.constant 0 : index
    %40 = vector.load %arg4[%c0_17, %c0_18, %c0_19, %c0_20] : memref<1x2x8x128xf32, #tpu.memory_space<vmem>>, vector<1x1x8x128xf32>
    %41 = vector.shape_cast %40 : vector<1x1x8x128xf32> to vector<8x128xf32>
    %42 = vector.shape_cast %39 : vector<8x128xf32> to vector<1x1x8x128xf32>
    tpu.vector_store %arg4[%c0_17, %c0_18, %c0_19, %c0_20], %42 {strides = array<i32>} : memref<1x2x8x128xf32, #tpu.memory_space<vmem>>, vector<1x1x8x128xf32>,
    %c0_21 = arith.constant 0 : index
    %c1 = arith.constant 1 : index
    %c0_22 = arith.constant 0 : index
    %c0_23 = arith.constant 0 : index
    %43 = vector.load %arg4[%c0_21, %c1, %c0_22, %c0_23] : memref<1x2x8x128xf32, #tpu.memory_space<vmem>>, vector<1x1x8x128xf32>
    %44 = vector.shape_cast %43 : vector<1x1x8x128xf32> to vector<8x128xf32>
    %45 = arith.addf %44, %36 : vector<8x128xf32>
    %c0_24 = arith.constant 0 : index
    %c1_25 = arith.constant 1 : index
    %c0_26 = arith.constant 0 : index
    %c0_27 = arith.constant 0 : index
    %46 = vector.load %arg4[%c0_24, %c1_25, %c0_26, %c0_27] : memref<1x2x8x128xf32, #tpu.memory_space<vmem>>, vector<1x1x8x128xf32>
    %47 = vector.shape_cast %46 : vector<1x1x8x128xf32> to vector<8x128xf32>
    %48 = vector.shape_cast %45 : vector<8x128xf32> to vector<1x1x8x128xf32>
    tpu.vector_store %arg4[%c0_24, %c1_25, %c0_26, %c0_27], %48 {strides = array<i32>} : memref<1x2x8x128xf32, #tpu.memory_space<vmem>>, vector<1x1x8x128xf32>,
    return
  }
  func.func @transform_0(%arg0: i32, %arg1: i32) -> (i32, i32) {
    %c1_i32 = arith.constant 1 : i32
    %0 = arith.muli %arg0, %c1_i32 : i32
    %1 = arith.addi %0, %arg1 : i32
    %c0_i32 = arith.constant 0 : i32
    %2 = arith.minsi %1, %c0_i32 : i32
    %c0_i32_0 = arith.constant 0 : i32
    %c0_i32_1 = arith.constant 0 : i32
    return %2, %c0_i32_0 : i32, i32
  }
  func.func @transform_1(%arg0: i32, %arg1: i32) -> (i32, i32) {
    %c1_i32 = arith.constant 1 : i32
    %0 = arith.muli %arg0, %c1_i32 : i32
    %1 = arith.addi %0, %arg1 : i32
    %c0_i32 = arith.constant 0 : i32
    %2 = arith.minsi %1, %c0_i32 : i32
    %c0_i32_0 = arith.constant 0 : i32
    %c0_i32_1 = arith.constant 0 : i32
    return %2, %c0_i32_0 : i32, i32
  }
  func.func @transform_2(%arg0: i32, %arg1: i32) -> (i32, i32, i32, i32) {
    %c0_i32 = arith.constant 0 : i32
    %c0_i32_0 = arith.constant 0 : i32
    %c0_i32_1 = arith.constant 0 : i32
    %c0_i32_2 = arith.constant 0 : i32
    return %arg0, %c0_i32, %c0_i32_0, %c0_i32_1 : i32, i32, i32, i32
  }
}

</mosaic_0001>

<llo_original>
// kernel: tpu_custom_call.1
$region0: #{tpu_custom_call.1}
  #allocation0 [shape = 'u32[]', space=smem, size = 0x4, offset = 0x4, fixed_abs, tag = 'smem constant byte address 0x4 - core index']
  #allocation1 [shape = 'u32[72,128]{1,0:T(1,128)}', space=vmem, size = 0x9000, scoped, tag = 'internal scratch']
  %s0 = inlined_call_operand.hbm [shape: f32[16,128], index: 0, kind: input, shape index: {}]
  %s1 = inlined_call_operand.hbm [shape: f32[16,128], index: 1, kind: input, shape index: {}]
  %s2 = inlined_call_operand.hbm [shape: f32[2,2,8,128], index: 2, kind: output, shape index: {}]
  %s3 = sld [smem:[#allocation0]]
  $region53: #{tpu_custom_call.1} parent=0
    _
  %s5 = ssub.s32 1, %s3
  %s6 = scalar_select 0, %s5, %s3
  $region1: #{tpu_custom_call.1} parent=0
    #allocation2 [shape = 'u8[16384]{0}', space=vmem, size = 0x4000, scoped, tag = 'input window, operand 0']
    #allocation3 [shape = 's32[2]{0}', space=sflag, size = 0x8, scoped, tag = 'scoped memory for tpu_custom_call.1']
    #allocation4 [shape = 's32[2]{0}', space=sflag, size = 0x8, scoped, tag = 'scoped memory for tpu_custom_call.1']
    #allocation5 [shape = 'u8[16384]{0}', space=vmem, size = 0x4000, scoped, tag = 'input window, operand 1']
    #allocation6 [shape = 's32[2]{0}', space=sflag, size = 0x8, scoped, tag = 'scoped memory for tpu_custom_call.1']
    #allocation7 [shape = 'u8[16384]{0}', space=vmem, size = 0x4000, scoped, tag = 'output window, operand 0']
    %7 = vsyncpa [#allocation3], 0
    %s8 = scalar_lea.sflag [#allocation3], 1
    %9 = vsyncpa %s8, 0
    %10 = vsyncpa [#allocation6], 0
    %s11 = scalar_lea.sflag [#allocation6], 1
    %12 = vsyncpa %s11, 0
    %13 = vsyncpa [#allocation4], 0
    %s14 = scalar_lea.sflag [#allocation4], 1
    %15 = vsyncpa %s14, 0
    loop: start=0, step=1, limit=4
    $region2: #{tpu_custom_call.1} parent=1 // loop_pre_header
      _
    $region3: #{tpu_custom_call.1} parent=1 // loop_header
      %s17 = sphi 0, %s21
      %p18 = scmp.ge.s32.totalorder %s17, 4
      %s24 = sphi 0, %s36
      %s25 = sphi 0, %s32
      %s26 = sphi 0, %s24
      %s27 = sphi 0, %s25
      %s28 = sphi 0, %s26
      %s29 = sphi 0, %s27
      %s45 = sphi 0, %s47
      %s48 = sphi 0, %s45
      %s49 = sphi 0, %s48
      %s65 = sphi 0, %s49
      %s77 = sphi 0, %s79
      %s80 = sphi 0, %s77
      %s81 = sphi 0, %s80
      %s97 = sphi 0, %s81
      %s103 = sphi 0, %s105
      %s106 = sphi 0, %s103
      %s107 = sphi 0, %s106
      %s123 = sphi 0, %s107
    $region4: #{tpu_custom_call.1} parent=1 // loop_header_branch
      %20 = sbr.rel (%p18) target = $region8
    $region5: #{tpu_custom_call.1} parent=1 // loop_body
      %s22 = ssub.s32 %s17, 1
      %s23 = ssub.s32 %s17, 2
      %s30 = sadd.s32 1, %s25
      %p31 = scmp.ge.s32.totalorder %s30, 1
      %s32 = scalar_select %p31, 0, %s30
      %s33 = sadd.s32 1, %s24
      %s34 = scalar_select %p31, %s33, %s24
      %p35 = scmp.ge.s32.totalorder %s34, 2
      %s36 = scalar_select %p35, 0, %s34
      %s37 = sadd.s32 %s24, %s25
      %p38 = scmp.lt.s32.totalorder %s37, 0
      %s39 = scalar_select %p38, %s37, 0
      %s40 = sadd.s32 %s36, %s32
      %p41 = scmp.lt.s32.totalorder %s40, 0
      %s42 = scalar_select %p41, %s40, 0
      %s43 = ssub.s32 %s39, %s42
      %p44 = scmp.eq.s32.totalorder %s43, 0
      %s46 = sadd.s32 %s45, 1
      %s47 = scalar_select %p44, %s45, %s46
      %p50 = pneg %p44
      %p51 = scmp.eq.s32.totalorder %s17, 1
      %p52 = por %p50, %p51
      %p53 = scmp.ne.s32.totalorder %s45, %s48
      %p54 = scmp.eq.s32.totalorder %s17, 0
      %p55 = por %p53, %p54
      %p56 = scmp.ne.s32.totalorder %s45, %s48
      %p57 = scmp.eq.s32.totalorder %s22, 1
      %p58 = por %p56, %p57
      %p59 = scmp.ne.s32.totalorder %s48, %s49
      %p60 = scmp.eq.s32.totalorder %s22, 0
      %p61 = por %p59, %p60
      %p62 = scmp.ne.s32.totalorder %s48, %s49
      %p63 = scmp.eq.s32.totalorder %s23, 1
      %p64 = por %p62, %p63
      %p66 = scmp.ne.s32.totalorder %s49, %s65
      %p67 = scmp.eq.s32.totalorder %s23, 0
      %p68 = por %p66, %p67
      %s69 = sadd.s32 %s24, %s25
      %p70 = scmp.lt.s32.totalorder %s69, 0
      %s71 = scalar_select %p70, %s69, 0
      %s72 = sadd.s32 %s36, %s32
      %p73 = scmp.lt.s32.totalorder %s72, 0
      %s74 = scalar_select %p73, %s72, 0
      %s75 = ssub.s32 %s71, %s74
      %p76 = scmp.eq.s32.totalorder %s75, 0
      %s78 = sadd.s32 %s77, 1
      %s79 = scalar_select %p76, %s77, %s78
      %p82 = pneg %p76
      %p83 = scmp.eq.s32.totalorder %s17, 1
      %p84 = por %p82, %p83
      %p85 = scmp.ne.s32.totalorder %s77, %s80
      %p86 = scmp.eq.s32.totalorder %s17, 0
      %p87 = por %p85, %p86
      %p88 = scmp.ne.s32.totalorder %s77, %s80
      %p89 = scmp.eq.s32.totalorder %s22, 1
      %p90 = por %p88, %p89
      %p91 = scmp.ne.s32.totalorder %s80, %s81
      %p92 = scmp.eq.s32.totalorder %s22, 0
      %p93 = por %p91, %p92
      %p94 = scmp.ne.s32.totalorder %s80, %s81
      %p95 = scmp.eq.s32.totalorder %s23, 1
      %p96 = por %p94, %p95
      %p98 = scmp.ne.s32.totalorder %s81, %s97
      %p99 = scmp.eq.s32.totalorder %s23, 0
      %p100 = por %p98, %p99
      %s101 = ssub.s32 %s24, %s36
      %p102 = scmp.eq.s32.totalorder %s101, 0
      %s104 = sadd.s32 %s103, 1
      %s105 = scalar_select %p102, %s103, %s104
      %p108 = pneg %p102
      %p109 = scmp.eq.s32.totalorder %s17, 1
      %p110 = por %p108, %p109
      %p111 = scmp.ne.s32.totalorder %s103, %s106
      %p112 = scmp.eq.s32.totalorder %s17, 0
      %p113 = por %p111, %p112
      %p114 = scmp.ne.s32.totalorder %s103, %s106
      %p115 = scmp.eq.s32.totalorder %s22, 1
      %p116 = por %p114, %p115
      %p117 = scmp.ne.s32.totalorder %s106, %s107
      %p118 = scmp.eq.s32.totalorder %s22, 0
      %p119 = por %p117, %p118
      %p120 = scmp.ne.s32.totalorder %s106, %s107
      %p121 = scmp.eq.s32.totalorder %s23, 1
      %p122 = por %p120, %p121
      %p124 = scmp.ne.s32.totalorder %s107, %s123
      %p125 = scmp.eq.s32.totalorder %s23, 0
      %p126 = por %p124, %p125
      %p127 = scmp.le.s32.totalorder 1, %s17
      %p128 = scmp.lt.s32.totalorder %s17, 3
      %p129 = pnand %p127, %p128
      %p130 = pneg %p129
      // Predicated region
      $region9: #{tpu_custom_call.1} parent=5 // pred_check
        _
      $region10: #{tpu_custom_call.1} parent=5 // pred_check_branch
        %132 = sbr.rel (%p129) target = $region12
      $region11: #{tpu_custom_call.1} parent=5 // pred_region
        %s133 = ssub.s32 %s17, 1
      $region12: #{tpu_custom_call.1} parent=5 // pred_fallthru
        _
      %p134 = scmp.lt.s32.totalorder %s17, 2
      // Predicated region
      $region13: #{tpu_custom_call.1} parent=5 // pred_check
        %p135 = pneg %p134
      $region14: #{tpu_custom_call.1} parent=5 // pred_check_branch
        %137 = sbr.rel (%p135) target = $region16
      $region15: #{tpu_custom_call.1} parent=5 // pred_region
        // Predicated region
        $region17: #{tpu_custom_call.1} parent=15 // pred_check
          %p138 = pneg %p55
        $region18: #{tpu_custom_call.1} parent=15 // pred_check_branch
          %140 = sbr.rel (%p138) target = $region20
        $region19: #{tpu_custom_call.1} parent=15 // pred_region
          %s141 = sand.u32 %s45, 1
          %s142 = scalar_lea.sflag [#allocation3], %s141
          %s143 = sand.u32 %s45, 1
          %s144 = smul.addr %s143, 16
          %s145 = scalar_lea.vmem [#allocation2], %s144
          %s146 = sadd.s32 %s24, %s25
          %p147 = scmp.lt.s32.totalorder %s146, 0
          %s148 = scalar_select %p147, %s146, 0
          %s149 = smul.u32 2, %s148
          %151 = vsyncadd %s142, 0
          %s152 = smul.addr %s149, 8
          %s153 = scalar_lea.hbm %s0, %s152
          %s154 = sshll.u32 %s153, 4
          %s155 = int_to_ptr.hbm [resolvable:$true] %s154
          %s156 = sshll.u32 %s145, 4
          %s157 = int_to_ptr.vmem [resolvable:$true] %s156
          %162 = dma.hbm_to_vmem [thread:$0]  %s155, 256, %s157, %s142, 128, 128, 8
        $region20: #{tpu_custom_call.1} parent=15 // pred_fallthru
          _
        // Predicated region
        $region21: #{tpu_custom_call.1} parent=15 // pred_check
          %p163 = pneg %p87
        $region22: #{tpu_custom_call.1} parent=15 // pred_check_branch
          %165 = sbr.rel (%p163) target = $region24
        $region23: #{tpu_custom_call.1} parent=15 // pred_region
          %s166 = sand.u32 %s77, 1
          %s167 = scalar_lea.sflag [#allocation6], %s166
          %s168 = sand.u32 %s77, 1
          %s169 = smul.addr %s168, 16
          %s170 = scalar_lea.vmem [#allocation5], %s169
          %s171 = sadd.s32 %s24, %s25
          %p172 = scmp.lt.s32.totalorder %s171, 0
          %s173 = scalar_select %p172, %s171, 0
          %s174 = smul.u32 2, %s173
          %176 = vsyncadd %s167, 0
          %s177 = smul.addr %s174, 8
          %s178 = scalar_lea.hbm %s1, %s177
          %s179 = sshll.u32 %s178, 4
          %s180 = int_to_ptr.hbm [resolvable:$true] %s179
          %s181 = sshll.u32 %s170, 4
          %s182 = int_to_ptr.vmem [resolvable:$true] %s181
          %187 = dma.hbm_to_vmem [thread:$0]  %s180, 256, %s182, %s167, 128, 128, 8
        $region24: #{tpu_custom_call.1} parent=15 // pred_fallthru
          _
      $region16: #{tpu_custom_call.1} parent=5 // pred_fallthru
        _
      %p188 = scmp.le.s32.totalorder 1, %s17
      %p189 = scmp.lt.s32.totalorder %s17, 3
      %p190 = pnand %p188, %p189
      %p191 = pneg %p190
      // Predicated region
      $region25: #{tpu_custom_call.1} parent=5 // pred_check
        _
      $region26: #{tpu_custom_call.1} parent=5 // pred_check_branch
        %193 = sbr.rel (%p190) target = $region28
      $region27: #{tpu_custom_call.1} parent=5 // pred_region
        %s194 = ssub.s32 %s17, 1
        %s195 = sand.u32 %s48, 1
        %s196 = scalar_lea.sflag [#allocation3], %s195
        %s197 = sand.u32 %s48, 1
        %s198 = smul.addr %s197, 16
        %s199 = scalar_lea.vmem [#allocation2], %s198
        // Predicated region
        $region29: #{tpu_custom_call.1} parent=27 // pred_check
          %p200 = pneg %p61
        $region30: #{tpu_custom_call.1} parent=27 // pred_check_branch
          %202 = sbr.rel (%p200) target = $region32
        $region31: #{tpu_custom_call.1} parent=27 // pred_region
          %204 = dma.done %s196, 256
        $region32: #{tpu_custom_call.1} parent=27 // pred_fallthru
          _
        %s205 = sand.u32 %s80, 1
        %s206 = scalar_lea.sflag [#allocation6], %s205
        %s207 = sand.u32 %s80, 1
        %s208 = smul.addr %s207, 16
        %s209 = scalar_lea.vmem [#allocation5], %s208
        // Predicated region
        $region33: #{tpu_custom_call.1} parent=27 // pred_check
          %p210 = pneg %p93
        $region34: #{tpu_custom_call.1} parent=27 // pred_check_branch
          %212 = sbr.rel (%p210) target = $region36
        $region35: #{tpu_custom_call.1} parent=27 // pred_region
          %214 = dma.done %s206, 256
        $region36: #{tpu_custom_call.1} parent=27 // pred_fallthru
          _
        %s215 = sand.u32 %s48, 1
        %s216 = scalar_lea.sflag [#allocation3], %s215
        %s217 = sand.u32 %s48, 1
        %s218 = smul.addr %s217, 16
        %s219 = scalar_lea.vmem [#allocation2], %s218
        %p220 = pneg %p61
        %p221 = pneg %p58
        %s222 = sand.u32 %s80, 1
        %s223 = scalar_lea.sflag [#allocation6], %s222
        %s224 = sand.u32 %s80, 1
        %s225 = smul.addr %s224, 16
        %s226 = scalar_lea.vmem [#allocation5], %s225
        %p227 = pneg %p93
        %p228 = pneg %p90
        %p229 = pneg %p119
        %p230 = pneg %p116
        %s231 = sand.u32 %s106, 1
        %s232 = scalar_lea.sflag [#allocation4], %s231
        %s233 = sand.u32 %s106, 1
        %s234 = smul.addr %s233, 16
        %s235 = scalar_lea.vmem [#allocation7], %s234
        %s236 = sadd.s32 %s26, %s27
        %p237 = scmp.lt.s32.totalorder %s236, 0
        %s238 = scalar_select %p237, %s236, 0
        %s239 = smul.u32 2, %s238
        %s240 = sadd.s32 %s26, %s27
        %p241 = scmp.lt.s32.totalorder %s240, 0
        %s242 = scalar_select %p241, %s240, 0
        %s243 = smul.u32 2, %s242
        %p244 = scmp.eq.s32.totalorder %s27, 0
        // Predicated region
        $region37: #{tpu_custom_call.1} parent=27 // pred_check
          %p245 = pneg %p244
        $region38: #{tpu_custom_call.1} parent=27 // pred_check_branch
          %247 = sbr.rel (%p245) target = $region40
        $region39: #{tpu_custom_call.1} parent=27 // pred_region
          %248 = vst [vmem:[%s235] sm:$0xff] 0.0
          %249 = vst [vmem:[%s235 + $0x8] sm:$0xff] 0.0
        $region40: #{tpu_custom_call.1} parent=27 // pred_fallthru
          _
        %v250 = vld [vmem:[%s199] sm:$0xff]
        %v251 = vld [vmem:[%s199 + $0x8] sm:$0xff]
        %v252 = vld [vmem:[%s209] sm:$0xff]
        %v253 = vld [vmem:[%s209 + $0x8] sm:$0xff]
        %v254 = vmul.f32 %v250, 0.5
        %v255 = vmul.f32 %v251, 0.5
        %v256 = vtanh.pop %v254
        %v257 = vtanh.pop %v255
        %v258 = vmul.f32 %v256, 0.5
        %v259 = vmul.f32 %v257, 0.5
        %v260 = vadd.f32 %v258, 0.5
        %v261 = vadd.f32 %v259, 0.5
        %s262 = sadd.s32 %s26, %s27
        %s263 = smul.u32 %s262, 16
        %v264 = vlaneseq
        %v265 = vshrl.u32 %v264, 7
        %v266 = vadd.s32 %v265, 8
        %v267 = vstv %s263
        %v268 = vadd.s32 %v267, %v265
        %v269 = vadd.s32 %v267, %v266
        %v270 = vlaneseq
        %v271 = vand.u32 %v270, 127
        %vm272 = vcmp.lt.s32.totalorder %v268, 16
        %vm273 = vcmp.lt.s32.totalorder %v269, 16
        %vm274 = vcmp.eq.s32.totalorder %v268, 16
        %vm275 = vcmp.eq.s32.totalorder %v269, 16
        %vm276 = vcmp.lt.s32.totalorder %v271, 0
        %vm277 = vmand %vm274, %vm276
        %vm278 = vmand %vm275, %vm276
        %vm279 = vmor %vm272, %vm277
        %vm280 = vmor %vm273, %vm278
        %v281 = vsel %vm279, %v260, 0.0
        %v282 = vsel %vm280, %v261, 0.0
        %v283 = vsel %vm279, %v252, 0.0
        %v284 = vsel %vm280, %v253, 0.0
        %v285 = vmul.f32 %v281, %v283
        %v286 = vmul.f32 %v282, %v284
        %v287 = vadd.f32 %v285, %v286
        %v288 = vadd.f32 %v281, %v283
        %v289 = vadd.f32 %v282, %v284
        %v290 = vadd.f32 %v288, %v289
        %v291 = vld [vmem:[%s235] sm:$0xff]
        %v292 = vadd.f32 %v291, %v287
        %293 = vst [vmem:[%s235] sm:$0xff] %v292
        %s294 = scalar_lea.vmem %s235, 8 [#allocation7]
        %v295 = vld [vmem:[%s294] sm:$0xff]
        %v296 = vadd.f32 %v295, %v290
        %297 = vst [vmem:[%s294] sm:$0xff] %v296
        %s298 = sand.u32 %s106, 1
        %s299 = scalar_lea.sflag [#allocation4], %s298
        %s300 = sand.u32 %s106, 1
        %s301 = smul.addr %s300, 16
        %s302 = scalar_lea.vmem [#allocation7], %s301
        // Predicated region
        $region41: #{tpu_custom_call.1} parent=27 // pred_check
          %p303 = pneg %p116
        $region42: #{tpu_custom_call.1} parent=27 // pred_check_branch
          %305 = sbr.rel (%p303) target = $region44
        $region43: #{tpu_custom_call.1} parent=27 // pred_region
          %307 = vsyncadd %s299, 0
          %s308 = smul.addr %s26, 2
          %s309 = smul.addr %s308, 8
          %s310 = scalar_lea.hbm %s2, %s309
          %s311 = sshll.u32 %s302, 4
          %s312 = int_to_ptr.vmem [resolvable:$true] %s311
          %s313 = sshll.u32 %s310, 4
          %s314 = int_to_ptr.hbm [resolvable:$true] %s313
          %319 = dma.vmem_to_hbm [thread:$0]  %s312, 256, %s314, %s299, 128, 128, 8
        $region44: #{tpu_custom_call.1} parent=27 // pred_fallthru
          _
      $region28: #{tpu_custom_call.1} parent=5 // pred_fallthru
        _
      %p320 = scmp.le.s32.totalorder 2, %s17
      // Predicated region
      $region45: #{tpu_custom_call.1} parent=5 // pred_check
        %p321 = pneg %p320
      $region46: #{tpu_custom_call.1} parent=5 // pred_check_branch
        %323 = sbr.rel (%p321) target = $region48
      $region47: #{tpu_custom_call.1} parent=5 // pred_region
        %s324 = ssub.s32 %s17, 2
        // Predicated region
        $region49: #{tpu_custom_call.1} parent=47 // pred_check
          %p325 = pneg %p122
        $region50: #{tpu_custom_call.1} parent=47 // pred_check_branch
          %327 = sbr.rel (%p325) target = $region52
        $region51: #{tpu_custom_call.1} parent=47 // pred_region
          %s328 = sand.u32 %s107, 1
          %s329 = scalar_lea.sflag [#allocation4], %s328
          %s330 = sand.u32 %s107, 1
          %s331 = smul.addr %s330, 16
          %s332 = scalar_lea.vmem [#allocation7], %s331
          %334 = dma.done %s329, 256
        $region52: #{tpu_custom_call.1} parent=47 // pred_fallthru
          _
      $region48: #{tpu_custom_call.1} parent=5 // pred_fallthru
        _
    $region6: #{tpu_custom_call.1} parent=1 // loop_footer
      %s21 = sadd.s32 1, %s17
    $region7: #{tpu_custom_call.1} parent=1 // loop_footer_branch
      %16 = sbr.rel target = $region3
    $region8: #{tpu_custom_call.1} parent=1 // loop_exit
      _
    %335 = vsyncpa [#allocation3], 1
    %s336 = scalar_lea.sflag [#allocation3], 1
    %337 = vsyncpa %s336, 1
    %338 = vsyncpa [#allocation6], 1
    %s339 = scalar_lea.sflag [#allocation6], 1
    %340 = vsyncpa %s339, 1
    %341 = vsyncpa [#allocation4], 1
    %s342 = scalar_lea.sflag [#allocation4], 1
    %343 = vsyncpa %s342, 1

</llo_original>
